<compile_context>
chip_gen: v7x
topology: tpu7x:2x2x1
jax: 0.10.0
libtpu: 0.0.40
codegen_flags: <defaults>
</compile_context>

<pallas_src>
from functools import partial

import numpy as np
import jax
import jax.numpy as jnp
from jax.experimental import pallas as pl
from jax.experimental.pallas import tpu as pltpu


def _round_up(x, m):
    return ((x + m - 1) // m) * m


def _unpool_kernel(x_hbm, w_ref, b_ref, o_ref, xbuf, sem,
                   *, S, Kp, TQ, W, NQ, Cp, row_min, taps):
    """One (batch element n, q-tile qi) grid step.

    x_hbm : (N, L_pad, Cp)  zero-padded bf16 input, left in HBM (pl.ANY)
    w_ref : (S*Kp, Cp, Cp)  per-(phase, tap) folded weights, VMEM resident
    b_ref : (1, Cp)         bias (f32)
    o_ref : (1, TQ, S*Cp)   output tile, phases packed on the lane axis
    xbuf  : (2, W, Cp)      manual double-buffered input window (scratch)
    sem   : (2,)            DMA semaphores
    taps  : per-phase static tuple of (tap index j, in-window row offset)
    """
    n = pl.program_id(0)
    qi = pl.program_id(1)
    slot = qi & 1

    def window_copy(q_idx, s):
        row0 = q_idx * TQ + row_min
        return pltpu.make_async_copy(
            x_hbm.at[n, pl.ds(row0, W), :], xbuf.at[s], sem.at[s])

    # Prime the ring buffer at the first q-tile of this batch element.
    @pl.when(qi == 0)
    def _():
        window_copy(0, 0).start()

    # Prefetch the next q-tile's window into the other slot; it lands while we
    # compute on this one (qi is an "arbitrary" -> sequential grid axis).
    @pl.when(qi + 1 < NQ)
    def _():
        window_copy(qi + 1, 1 - slot).start()

    # Wait for this step's window (descriptor only needs matching shape/slot).
    window_copy(0, slot).wait()

    win = xbuf[slot]                       # (W, Cp) bf16 window in VMEM
    bias = b_ref[...]                      # (1, Cp) f32

    for r in range(S):                     # static, small
        acc = jnp.zeros((TQ, Cp), jnp.float32)
        for j, off in taps[r]:             # only the real taps of this phase
            acc = acc + jnp.dot(win[off:off + TQ, :], w_ref[r * Kp + j],
                                preferred_element_type=jnp.float32)
        acc = jnp.maximum(acc + bias, 0.0)                 # bias + ReLU epilogue
        # Lane-aligned (multiple-of-128 offset) unmasked store per phase.
        o_ref[0, :, r * Cp:(r + 1) * Cp] = acc.astype(o_ref.dtype)


def stride_unpool1d(x, weight, bias, *, stride, padding=0, tq_max=512,
                    compute_dtype=jnp.bfloat16):
    """Forward pass of StrideUnPool1d (ConvTranspose1d + ReLU), PyTorch semantics.

    x      : (N, C, L_in)  float32, NCL like PyTorch
    weight : (C, C, K)     PyTorch ConvTranspose1d weight layout (in, out, K)
    bias   : (C,)
    """
    N, C, L_in = x.shape
    K = weight.shape[2]
    S = int(stride)
    P = int(padding)
    L_out = (L_in - 1) * S - 2 * P + K
    assert L_out > 0

    Cp = _round_up(C, 128)                 # lane-dense / MXU-friendly channels
    # TODO(synk): when C << 128, channels alone waste ~Cp/C of MXU columns and
    #             output HBM write bandwidth; packing several q rows onto the
    #             lane axis would fix it but needs a different weight layout.

    Q = -(-L_out // S)                     # output rows per phase

    # ---- static per-phase / per-tap bookkeeping ----
    base = [(r + P) % S for r in range(S)]
    M = [(r + P) // S for r in range(S)]
    Kp_r = [max(0, -(-(K - base[r]) // S)) for r in range(S)]   # real taps per phase
    Kp = max(1, max(Kp_r))
    active = [r for r in range(S) if Kp_r[r] > 0]               # always non-empty
    dmin = min(M[r] - (Kp_r[r] - 1) for r in active)
    dmax = max(M[r] for r in active)
    span = dmax - dmin                                          # halo spread (rows)

    itemsize = np.dtype(compute_dtype).itemsize

    def vmem_est(tq):
        w = _round_up(tq + span, 16)
        return (2 * w * Cp * itemsize                 # x window ring buffer
                + 2 * tq * S * Cp * 4                 # double-buffered out block
                + 2 * S * Kp * Cp * Cp * itemsize     # resident folded weights
                + 4 * Cp * 4)                         # bias

    TQ = min(_round_up(Q, 8), _round_up(max(8, tq_max), 8))
    while TQ > 8 and vmem_est(TQ) > (28 << 20):       # safe across v5e/v6e/v7x
        TQ = max(8, _round_up(TQ // 2, 8))
    NQ = -(-Q // TQ)
    Qp = NQ * TQ

    PL = max(0, -dmin)                                # left zero-pad rows
    row_min = dmin + PL                               # HBM row of window start at q0=0
    W = _round_up(TQ + span, 16)                      # window rows per q-tile
    PR = max(0, (NQ - 1) * TQ + row_min + W - (L_in + PL))   # right zero-pad rows
    L_pad = L_in + PL + PR

    # Per-phase static (tap j, in-window row offset); offset = M_r - j - dmin.
    taps = tuple(tuple((j, M[r] - j - dmin) for j in range(Kp_r[r]))
                 for r in range(S))

    # ---- host-side (numpy) constant fold: one (Cp, Cp) block per (phase, tap) ----
    w_src = np.asarray(weight, np.float32)
    b_src = np.asarray(bias, np.float32)
    w_np = np.zeros((S * Kp, Cp, Cp), np.float32)
    for r in range(S):
        for j in range(Kp_r[r]):
            k = base[r] + j * S                       # guaranteed < K
            w_np[r * Kp + j, :C, :C] = w_src[:, :, k]
    b_np = np.zeros((1, Cp), np.float32)
    b_np[0, :C] = b_src
    w_stack = jnp.asarray(w_np, dtype=compute_dtype)
    b_pad = jnp.asarray(b_np)

    # ---- plain-JAX layout plumbing: NCL -> NLC, edge zero pad, bf16 cast ----
    x_nlc = jnp.transpose(x, (0, 2, 1)).astype(compute_dtype)
    x_pad = jnp.pad(x_nlc, ((0, 0), (PL, PR), (0, Cp - C)))    # (N, L_pad, Cp)

    vmem_limit = int(min(max(2 * vmem_est(TQ) + (4 << 20), 16 << 20), 60 << 20))

    kernel = partial(_unpool_kernel, S=S, Kp=Kp, TQ=TQ, W=W, NQ=NQ, Cp=Cp,
                     row_min=row_min, taps=taps)

    out = pl.pallas_call(
        kernel,
        out_shape=jax.ShapeDtypeStruct((N, Qp, S * Cp), jnp.float32),
        grid_spec=pltpu.PrefetchScalarGridSpec(
            num_scalar_prefetch=0,
            grid=(N, NQ),
            in_specs=[
                pl.BlockSpec(memory_space=pl.ANY),                        # x stays in HBM
                pl.BlockSpec((S * Kp, Cp, Cp), lambda n, qi: (0, 0, 0)),  # resident weights
                pl.BlockSpec((1, Cp), lambda n, qi: (0, 0)),              # resident bias
            ],
            out_specs=pl.BlockSpec((1, TQ, S * Cp), lambda n, qi: (n, qi, 0)),
            scratch_shapes=[
                pltpu.VMEM((2, W, Cp), compute_dtype),   # input window ring buffer
                pltpu.SemaphoreType.DMA((2,)),
            ],
        ),
        compiler_params=pltpu.CompilerParams(
            # Batch axis is megacore-parallel; the q-tile axis must stay
            # sequential because of the manual window-prefetch chain.
            # TODO(synk): for N == 1 on v7x, split the q axis across the two
            #             TensorCores (independent prefetch chains per core).
            dimension_semantics=("parallel", "arbitrary"),
            vmem_limit_bytes=vmem_limit,
        ),
    )(x_pad, w_stack, b_pad)

    # (N, Qp, S*Cp) row-major == (row q, phase r, channel c) == NLC order.
    out = out.reshape(N, Qp * S, Cp)[:, :L_out, :C]    # crop tile / channel padding
    return jnp.transpose(out, (0, 2, 1))               # back to (N, C, L_out)


# ----------------------------- reference & demo -----------------------------
def _ref_forward(x, weight, bias, stride, padding):
    """Direct PyTorch-semantics ConvTranspose1d + ReLU (numpy, small sizes)."""
    x = np.asarray(x, np.float64)
    w = np.asarray(weight, np.float64)
    b = np.asarray(bias, np.float64)
    N, C, L = x.shape
    K = w.shape[2]
    L_out = (L - 1) * stride - 2 * padding + K
    out = np.zeros((N, C, L_out))
    for n in range(N):
        for l in range(L):
            for k in range(K):
                t = l * stride - padding + k
                if 0 <= t < L_out:
                    out[n, :, t] += x[n, :, l] @ w[:, :, k]
    out += b[None, :, None]
    return np.maximum(out, 0.0)


if __name__ == "__main__":
    key = jax.random.PRNGKey(0)
    N, C, L = 2, 8, 16          # batch, channels, input length
    K, S, P = 4, 2, 1           # pool_kernel, pool_stride, padding

    k1, k2, k3 = jax.random.split(key, 3)
    x = jax.random.normal(k1, (N, C, L), jnp.float32)
    weight = jax.random.normal(k2, (C, C, K), jnp.float32) * 0.2
    bias = jax.random.normal(k3, (C,), jnp.float32) * 0.1

    y_ref = _ref_forward(np.asarray(x), np.asarray(weight), np.asarray(bias), S, P)

    # Single q-tile path.
    y1 = jax.block_until_ready(stride_unpool1d(x, weight, bias, stride=S, padding=P))
    np.testing.assert_allclose(np.asarray(y1), y_ref, rtol=3e-2, atol=3e-2)

    # Multi q-tile path (exercises the manual double-buffered window prefetch).
    y2 = jax.block_until_ready(
        stride_unpool1d(x, weight, bias, stride=S, padding=P, tq_max=8))
    np.testing.assert_allclose(np.asarray(y2), y_ref, rtol=3e-2, atol=3e-2)

    print("KERNEL_OK")
</pallas_src>

<mosaic_0001>
module attributes {stable_mosaic.version = 11 : i64} {
  func.func @_unpool_kernel(%arg0: i32, %arg1: i32, %arg2: memref<2x32x128xbf16, #tpu.memory_space<any>>, %arg3: memref<4x128x128xbf16, #tpu.memory_space<vmem>>, %arg4: memref<1x128xf32, #tpu.memory_space<vmem>>, %arg5: memref<1x16x256xf32, #tpu.memory_space<vmem>>, %arg6: memref<2x32x128xbf16, #tpu.memory_space<vmem>>, %arg7: memref<2x!tpu.dma_semaphore, #tpu.memory_space<semaphore_mem>>) attributes {dimension_semantics = [#tpu.dimension_semantics<parallel>, #tpu.dimension_semantics<arbitrary>], iteration_bounds = array<i64: 2, 1>, scalar_prefetch = 0 : i64, scratch_operands = 2 : i64, tpu.core_type = #tpu.core_type<tc>, window_params = [{}, {pipeline_mode = #tpu.pipeline_mode<synchronous>, transform_indices = @transform_1, window_bounds = array<i64: 4, 128, 128>}, {pipeline_mode = #tpu.pipeline_mode<synchronous>, transform_indices = @transform_2, window_bounds = array<i64: 1, 128>}, {transform_indices = @transform_3, window_bounds = array<i64: 1, 16, 256>}]} {
    %c1_i32 = arith.constant 1 : i32
    %0 = arith.andi %arg1, %c1_i32 : i32
    %c0_i32 = arith.constant 0 : i32
    %1 = arith.cmpi eq, %arg1, %c0_i32 : i32
    %2 = arith.extui %1 : i1 to i32
    %c0_i32_0 = arith.constant 0 : i32
    %3 = arith.cmpi ne, %2, %c0_i32_0 : i32
    scf.if %3 {
      %c0_i32_32 = arith.constant 0 : i32
      %c0_i32_33 = arith.constant 0 : i32
      %c0_i32_34 = arith.constant 0 : i32
      %c0_i32_35 = arith.constant 0 : i32
      %54 = tpu.memref_slice %arg2[%arg0, %c0_i32_34, %c0_i32_35] : memref<2x32x128xbf16, #tpu.memory_space<any>> -> memref<1x32x128xbf16, #tpu.memory_space<any>>
      %55 = tpu.memref_squeeze %54 : memref<1x32x128xbf16, #tpu.memory_space<any>> -> memref<32x128xbf16, #tpu.memory_space<any>>
      %c0_i32_36 = arith.constant 0 : i32
      %c0_i32_37 = arith.constant 0 : i32
      %56 = tpu.memref_slice %arg6[%c0_i32_32, %c0_i32_36, %c0_i32_37] : memref<2x32x128xbf16, #tpu.memory_space<vmem>> -> memref<1x32x128xbf16, #tpu.memory_space<vmem>>
      %57 = tpu.memref_squeeze %56 : memref<1x32x128xbf16, #tpu.memory_space<vmem>> -> memref<32x128xbf16, #tpu.memory_space<vmem>>
      %58 = tpu.memref_slice %arg7[%c0_i32_33] : memref<2x!tpu.dma_semaphore, #tpu.memory_space<semaphore_mem>> -> memref<1x!tpu.dma_semaphore, #tpu.memory_space<semaphore_mem>>
      %59 = tpu.memref_squeeze %58 : memref<1x!tpu.dma_semaphore, #tpu.memory_space<semaphore_mem>> -> memref<!tpu.dma_semaphore, #tpu.memory_space<semaphore_mem>>
      tpu.enqueue_dma source(%55 : memref<32x128xbf16, #tpu.memory_space<any>>) target(%57 : memref<32x128xbf16, #tpu.memory_space<vmem>>) target_semaphore(%59 : memref<!tpu.dma_semaphore, #tpu.memory_space<semaphore_mem>>)
    } else {
    }
    %c1_i32_1 = arith.constant 1 : i32
    %4 = arith.addi %arg1, %c1_i32_1 : i32
    %c1_i32_2 = arith.constant 1 : i32
    %5 = arith.cmpi slt, %4, %c1_i32_2 : i32
    %6 = arith.extui %5 : i1 to i32
    %c0_i32_3 = arith.constant 0 : i32
    %7 = arith.cmpi ne, %6, %c0_i32_3 : i32
    scf.if %7 {
      %c1_i32_32 = arith.constant 1 : i32
      %54 = arith.addi %arg1, %c1_i32_32 : i32
      %c1_i32_33 = arith.constant 1 : i32
      %55 = arith.subi %c1_i32_33, %0 : i32
      %c16_i32 = arith.constant 16 : i32
      %56 = arith.muli %54, %c16_i32 : i32
      %c0_i32_34 = arith.constant 0 : i32
      %57 = arith.addi %56, %c0_i32_34 : i32
      %c0_i32_35 = arith.constant 0 : i32
      %58 = tpu.memref_slice %arg2[%arg0, %57, %c0_i32_35] : memref<2x32x128xbf16, #tpu.memory_space<any>> -> memref<1x32x128xbf16, #tpu.memory_space<any>>
      %59 = tpu.memref_squeeze %58 : memref<1x32x128xbf16, #tpu.memory_space<any>> -> memref<32x128xbf16, #tpu.memory_space<any>>
      %c0_i32_36 = arith.constant 0 : i32
      %c0_i32_37 = arith.constant 0 : i32
      %60 = tpu.memref_slice %arg6[%55, %c0_i32_36, %c0_i32_37] : memref<2x32x128xbf16, #tpu.memory_space<vmem>> -> memref<1x32x128xbf16, #tpu.memory_space<vmem>>
      %61 = tpu.memref_squeeze %60 : memref<1x32x128xbf16, #tpu.memory_space<vmem>> -> memref<32x128xbf16, #tpu.memory_space<vmem>>
      %62 = tpu.memref_slice %arg7[%55] : memref<2x!tpu.dma_semaphore, #tpu.memory_space<semaphore_mem>> -> memref<1x!tpu.dma_semaphore, #tpu.memory_space<semaphore_mem>>
      %63 = tpu.memref_squeeze %62 : memref<1x!tpu.dma_semaphore, #tpu.memory_space<semaphore_mem>> -> memref<!tpu.dma_semaphore, #tpu.memory_space<semaphore_mem>>
      tpu.enqueue_dma source(%59 : memref<32x128xbf16, #tpu.memory_space<any>>) target(%61 : memref<32x128xbf16, #tpu.memory_space<vmem>>) target_semaphore(%63 : memref<!tpu.dma_semaphore, #tpu.memory_space<semaphore_mem>>)
    } else {
    }
    %c0_i32_4 = arith.constant 0 : i32
    %c0_i32_5 = arith.constant 0 : i32
    %8 = tpu.memref_slice %arg2[%arg0, %c0_i32_4, %c0_i32_5] : memref<2x32x128xbf16, #tpu.memory_space<any>> -> memref<1x32x128xbf16, #tpu.memory_space<any>>
    %9 = tpu.memref_squeeze %8 : memref<1x32x128xbf16, #tpu.memory_space<any>> -> memref<32x128xbf16, #tpu.memory_space<any>>
    %c0_i32_6 = arith.constant 0 : i32
    %c0_i32_7 = arith.constant 0 : i32
    %10 = tpu.memref_slice %arg6[%0, %c0_i32_6, %c0_i32_7] : memref<2x32x128xbf16, #tpu.memory_space<vmem>> -> memref<1x32x128xbf16, #tpu.memory_space<vmem>>
    %11 = tpu.memref_squeeze %10 : memref<1x32x128xbf16, #tpu.memory_space<vmem>> -> memref<32x128xbf16, #tpu.memory_space<vmem>>
    %12 = tpu.memref_slice %arg7[%0] : memref<2x!tpu.dma_semaphore, #tpu.memory_space<semaphore_mem>> -> memref<1x!tpu.dma_semaphore, #tpu.memory_space<semaphore_mem>>
    %13 = tpu.memref_squeeze %12 : memref<1x!tpu.dma_semaphore, #tpu.memory_space<semaphore_mem>> -> memref<!tpu.dma_semaphore, #tpu.memory_space<semaphore_mem>>
    tpu.wait_dma2 semaphore(%13 : memref<!tpu.dma_semaphore, #tpu.memory_space<semaphore_mem>>) src(%9 : memref<32x128xbf16, #tpu.memory_space<any>>) dst(%11 : memref<32x128xbf16, #tpu.memory_space<vmem>>)
    %14 = arith.index_cast %0 : i32 to index
    %c0 = arith.constant 0 : index
    %c0_8 = arith.constant 0 : index
    %15 = vector.load %arg6[%14, %c0, %c0_8] : memref<2x32x128xbf16, #tpu.memory_space<vmem>>, vector<1x32x128xbf16>
    %16 = vector.shape_cast %15 : vector<1x32x128xbf16> to vector<32x128xbf16>
    %c0_9 = arith.constant 0 : index
    %c0_10 = arith.constant 0 : index
    %17 = vector.load %arg4[%c0_9, %c0_10] : memref<1x128xf32, #tpu.memory_space<vmem>>, vector<1x128xf32>
    %cst = arith.constant 0.000000e+00 : f32
    %18 = vector.broadcast %cst : f32 to vector<16x128xf32>
    %19 = vector.extract_strided_slice %16 {offsets = [1, 0], sizes = [16, 128], strides = [1, 1]} : vector<32x128xbf16> to vector<16x128xbf16>
    %c0_11 = arith.constant 0 : index
    %c0_12 = arith.constant 0 : index
    %c0_13 = arith.constant 0 : index
    %20 = vector.load %arg3[%c0_11, %c0_12, %c0_13] : memref<4x128x128xbf16, #tpu.memory_space<vmem>>, vector<1x128x128xbf16>
    %21 = vector.shape_cast %20 : vector<1x128x128xbf16> to vector<128x128xbf16>
    %cst_14 = arith.constant dense<0.000000e+00> : vector<16x128xf32>
    %22 = tpu.matmul %19, %21, %cst_14 {dimension_numbers = #tpu.dot_dimension_numbers<[1], [0], [0], [1], [0, 0, 1, 1], [], []>} : vector<16x128xbf16>, vector<128x128xbf16>, vector<16x128xf32> -> vector<16x128xf32>
    %23 = arith.addf %18, %22 : vector<16x128xf32>
    %24 = vector.extract_strided_slice %16 {offsets = [0, 0], sizes = [16, 128], strides = [1, 1]} : vector<32x128xbf16> to vector<16x128xbf16>
    %c1 = arith.constant 1 : index
    %c0_15 = arith.constant 0 : index
    %c0_16 = arith.constant 0 : index
    %25 = vector.load %arg3[%c1, %c0_15, %c0_16] : memref<4x128x128xbf16, #tpu.memory_space<vmem>>, vector<1x128x128xbf16>
    %26 = vector.shape_cast %25 : vector<1x128x128xbf16> to vector<128x128xbf16>
    %cst_17 = arith.constant dense<0.000000e+00> : vector<16x128xf32>
    %27 = tpu.matmul %24, %26, %cst_17 {dimension_numbers = #tpu.dot_dimension_numbers<[1], [0], [0], [1], [0, 0, 1, 1], [], []>} : vector<16x128xbf16>, vector<128x128xbf16>, vector<16x128xf32> -> vector<16x128xf32>
    %28 = arith.addf %23, %27 : vector<16x128xf32>
    %29 = vector.broadcast %17 : vector<1x128xf32> to vector<16x128xf32>
    %30 = arith.addf %28, %29 : vector<16x128xf32>
    %cst_18 = arith.constant 0.000000e+00 : f32
    %31 = vector.broadcast %cst_18 : f32 to vector<16x128xf32>
    %32 = arith.maximumf %30, %31 : vector<16x128xf32>
    %c0_19 = arith.constant 0 : index
    %c0_20 = arith.constant 0 : index
    %c0_21 = arith.constant 0 : index
    %33 = vector.load %arg5[%c0_19, %c0_20, %c0_21] : memref<1x16x256xf32, #tpu.memory_space<vmem>>, vector<1x16x128xf32>
    %34 = vector.shape_cast %33 : vector<1x16x128xf32> to vector<16x128xf32>
    %35 = vector.shape_cast %32 : vector<16x128xf32> to vector<1x16x128xf32>
    tpu.vector_store %arg5[%c0_19, %c0_20, %c0_21], %35 {strides = array<i32>} : memref<1x16x256xf32, #tpu.memory_space<vmem>>, vector<1x16x128xf32>,
    %cst_22 = arith.constant 0.000000e+00 : f32
    %36 = vector.broadcast %cst_22 : f32 to vector<16x128xf32>
    %37 = vector.extract_strided_slice %16 {offsets = [2, 0], sizes = [16, 128], strides = [1, 1]} : vector<32x128xbf16> to vector<16x128xbf16>
    %c2 = arith.constant 2 : index
    %c0_23 = arith.constant 0 : index
    %c0_24 = arith.constant 0 : index
    %38 = vector.load %arg3[%c2, %c0_23, %c0_24] : memref<4x128x128xbf16, #tpu.memory_space<vmem>>, vector<1x128x128xbf16>
    %39 = vector.shape_cast %38 : vector<1x128x128xbf16> to vector<128x128xbf16>
    %cst_25 = arith.constant dense<0.000000e+00> : vector<16x128xf32>
    %40 = tpu.matmul %37, %39, %cst_25 {dimension_numbers = #tpu.dot_dimension_numbers<[1], [0], [0], [1], [0, 0, 1, 1], [], []>} : vector<16x128xbf16>, vector<128x128xbf16>, vector<16x128xf32> -> vector<16x128xf32>
    %41 = arith.addf %36, %40 : vector<16x128xf32>
    %42 = vector.extract_strided_slice %16 {offsets = [1, 0], sizes = [16, 128], strides = [1, 1]} : vector<32x128xbf16> to vector<16x128xbf16>
    %c3 = arith.constant 3 : index
    %c0_26 = arith.constant 0 : index
    %c0_27 = arith.constant 0 : index
    %43 = vector.load %arg3[%c3, %c0_26, %c0_27] : memref<4x128x128xbf16, #tpu.memory_space<vmem>>, vector<1x128x128xbf16>
    %44 = vector.shape_cast %43 : vector<1x128x128xbf16> to vector<128x128xbf16>
    %cst_28 = arith.constant dense<0.000000e+00> : vector<16x128xf32>
    %45 = tpu.matmul %42, %44, %cst_28 {dimension_numbers = #tpu.dot_dimension_numbers<[1], [0], [0], [1], [0, 0, 1, 1], [], []>} : vector<16x128xbf16>, vector<128x128xbf16>, vector<16x128xf32> -> vector<16x128xf32>
    %46 = arith.addf %41, %45 : vector<16x128xf32>
    %47 = vector.broadcast %17 : vector<1x128xf32> to vector<16x128xf32>
    %48 = arith.addf %46, %47 : vector<16x128xf32>
    %cst_29 = arith.constant 0.000000e+00 : f32
    %49 = vector.broadcast %cst_29 : f32 to vector<16x128xf32>
    %50 = arith.maximumf %48, %49 : vector<16x128xf32>
    %c0_30 = arith.constant 0 : index
    %c0_31 = arith.constant 0 : index
    %c128 = arith.constant 128 : index
    %51 = vector.load %arg5[%c0_30, %c0_31, %c128] : memref<1x16x256xf32, #tpu.memory_space<vmem>>, vector<1x16x128xf32>
    %52 = vector.shape_cast %51 : vector<1x16x128xf32> to vector<16x128xf32>
    %53 = vector.shape_cast %50 : vector<16x128xf32> to vector<1x16x128xf32>
    tpu.vector_store %arg5[%c0_30, %c0_31, %c128], %53 {strides = array<i32>} : memref<1x16x256xf32, #tpu.memory_space<vmem>>, vector<1x16x128xf32>,
    return
  }
  func.func @transform_1(%arg0: i32, %arg1: i32) -> (i32, i32, i32) {
    %c0_i32 = arith.constant 0 : i32
    %c0_i32_0 = arith.constant 0 : i32
    %c0_i32_1 = arith.constant 0 : i32
    %c0_i32_2 = arith.constant 0 : i32
    return %c0_i32, %c0_i32_0, %c0_i32_1 : i32, i32, i32
  }
  func.func @transform_2(%arg0: i32, %arg1: i32) -> (i32, i32) {
    %c0_i32 = arith.constant 0 : i32
    %c0_i32_0 = arith.constant 0 : i32
    %c0_i32_1 = arith.constant 0 : i32
    return %c0_i32, %c0_i32_0 : i32, i32
  }
  func.func @transform_3(%arg0: i32, %arg1: i32) -> (i32, i32, i32) {
    %c0_i32 = arith.constant 0 : i32
    %c0_i32_0 = arith.constant 0 : i32
    return %arg0, %arg1, %c0_i32 : i32, i32, i32
  }
}

</mosaic_0001>

<llo_original>
// kernel: tpu_custom_call.1
$region0: #{tpu_custom_call.1}
  #allocation0 [shape = 'u32[]', space=smem, size = 0x4, offset = 0x4, fixed_abs, tag = 'smem constant byte address 0x4 - core index']
  #allocation1 [shape = 'u32[144,128]{1,0:T(1,128)}', space=vmem, size = 0x12000, scoped, tag = 'internal scratch']
  #allocation2 [shape = 'bf16[2,32,128]{2,1,0:T(16,128)(2,1)}', space=vmem, size = 0x4000, scoped, tag = 'scratch operand']
  #allocation3 [shape = 's32[2]{0}', space=sflag, size = 0x8, scoped, tag = 'scratch operand']
  #allocation8 [shape = 's32[]', space=sflag, size = 0x4, offset = 0, fixed_abs, tag = 'sflag constant byte address 0x0 - dummy sync flag']
  #allocation9 [shape = 's32[]', space=sflag, size = 0x4, offset = 0, fixed_abs, tag = 'sflag constant byte address 0x0 - dummy sync flag']
  #allocation10 [shape = 'u32[]', space=smem, size = 0x4, offset = 0x44, fixed_abs, tag = 'smem constant byte address 0x44 - assertion arg 0']
  #allocation11 [shape = 'u32[]', space=smem, size = 0x4, offset = 0x48, fixed_abs, tag = 'smem constant byte address 0x48 - assertion arg 1']
  #allocation12 [shape = 's32[]', space=sflag, size = 0x4, offset = 0, fixed_abs, tag = 'sflag constant byte address 0x0 - dummy sync flag']
  #allocation13 [shape = 's32[]', space=sflag, size = 0x4, offset = 0, fixed_abs, tag = 'sflag constant byte address 0x0 - dummy sync flag']
  %s0 = inlined_call_operand.hbm [shape: bf16[2,32,128], index: 0, kind: input, shape index: {}]
  %s1 = inlined_call_operand.hbm [shape: bf16[4,128,128], index: 1, kind: input, shape index: {}]
  %s2 = inlined_call_operand.vmem [shape: f32[1,128], index: 2, kind: input, shape index: {}]
  %s3 = inlined_call_operand.hbm [shape: f32[2,16,256], index: 3, kind: output, shape index: {}]
  %s4 = sld [smem:[#allocation0]]
  $region61: #{tpu_custom_call.1} parent=0
    _
  %s6 = ssub.s32 1, %s4
  %s7 = scalar_select 0, %s6, %s4
  $region1: #{tpu_custom_call.1} parent=0
    #allocation4 [shape = 'u8[131072]{0}', space=vmem, size = 0x20000, scoped, tag = 'input window, operand 1, single buffered']
    #allocation5 [shape = 's32[2]{0}', space=sflag, size = 0x8, scoped, tag = 'scoped memory for tpu_custom_call.1']
    #allocation6 [shape = 's32[2]{0}', space=sflag, size = 0x8, scoped, tag = 'scoped memory for tpu_custom_call.1']
    #allocation7 [shape = 'u8[32768]{0}', space=vmem, size = 0x8000, scoped, tag = 'output window, operand 0']
    %8 = vsyncpa [#allocation5], 0
    %9 = vsyncpa [#allocation6], 0
    %s10 = scalar_lea.sflag [#allocation6], 1
    %11 = vsyncpa %s10, 0
    loop: start=0, step=1, limit=4
    $region2: #{tpu_custom_call.1} parent=1 // loop_pre_header
      _
    $region3: #{tpu_custom_call.1} parent=1 // loop_header
      %s13 = sphi 0, %s17
      %p14 = scmp.ge.s32.totalorder %s13, 4
      %s20 = sphi 0, %s32
      %s21 = sphi 0, %s28
      %s22 = sphi 0, %s20
      %s23 = sphi 0, %s21
      %s24 = sphi 0, %s22
      %s25 = sphi 0, %s23
      %s33 = sphi 0, %s33
      %s35 = sphi 0, %s33
      %s36 = sphi 0, %s35
      %s50 = sphi 0, %s36
      %s54 = sphi 0, %s54
      %s56 = sphi 0, %s54
      %s57 = sphi 0, %s56
      %s71 = sphi 0, %s57
      %s79 = sphi 0, %s81
      %s82 = sphi 0, %s79
      %s83 = sphi 0, %s82
      %s99 = sphi 0, %s83
    $region4: #{tpu_custom_call.1} parent=1 // loop_header_branch
      %16 = sbr.rel (%p14) target = $region8
    $region5: #{tpu_custom_call.1} parent=1 // loop_body
      %s18 = ssub.s32 %s13, 1
      %s19 = ssub.s32 %s13, 2
      %s26 = sadd.s32 1, %s21
      %p27 = scmp.ge.s32.totalorder %s26, 1
      %s28 = scalar_select %p27, 0, %s26
      %s29 = sadd.s32 1, %s20
      %s30 = scalar_select %p27, %s29, %s20
      %p31 = scmp.ge.s32.totalorder %s30, 2
      %s32 = scalar_select %p31, 0, %s30
      %s34 = sadd.s32 %s33, 1
      %p37 = scmp.eq.s32.totalorder %s13, 1
      %p38 = scmp.ne.s32.totalorder %s33, %s35
      %p39 = scmp.eq.s32.totalorder %s13, 0
      %p40 = por %p38, %p39
      %p41 = scmp.ne.s32.totalorder %s33, %s35
      %p42 = scmp.eq.s32.totalorder %s18, 1
      %p43 = por %p41, %p42
      %p44 = scmp.ne.s32.totalorder %s35, %s36
      %p45 = scmp.eq.s32.totalorder %s18, 0
      %p46 = por %p44, %p45
      %p47 = scmp.ne.s32.totalorder %s35, %s36
      %p48 = scmp.eq.s32.totalorder %s19, 1
      %p49 = por %p47, %p48
      %p51 = scmp.ne.s32.totalorder %s36, %s50
      %p52 = scmp.eq.s32.totalorder %s19, 0
      %p53 = por %p51, %p52
      %s55 = sadd.s32 %s54, 1
      %p58 = scmp.eq.s32.totalorder %s13, 1
      %p59 = scmp.ne.s32.totalorder %s54, %s56
      %p60 = scmp.eq.s32.totalorder %s13, 0
      %p61 = por %p59, %p60
      %p62 = scmp.ne.s32.totalorder %s54, %s56
      %p63 = scmp.eq.s32.totalorder %s18, 1
      %p64 = por %p62, %p63
      %p65 = scmp.ne.s32.totalorder %s56, %s57
      %p66 = scmp.eq.s32.totalorder %s18, 0
      %p67 = por %p65, %p66
      %p68 = scmp.ne.s32.totalorder %s56, %s57
      %p69 = scmp.eq.s32.totalorder %s19, 1
      %p70 = por %p68, %p69
      %p72 = scmp.ne.s32.totalorder %s57, %s71
      %p73 = scmp.eq.s32.totalorder %s19, 0
      %p74 = por %p72, %p73
      %s75 = ssub.s32 %s20, %s32
      %s76 = ssub.s32 %s21, %s28
      %s77 = sor.u32 %s75, %s76
      %p78 = scmp.eq.s32.totalorder %s77, 0
      %s80 = sadd.s32 %s79, 1
      %s81 = scalar_select %p78, %s79, %s80
      %p84 = pneg %p78
      %p85 = scmp.eq.s32.totalorder %s13, 1
      %p86 = por %p84, %p85
      %p87 = scmp.ne.s32.totalorder %s79, %s82
      %p88 = scmp.eq.s32.totalorder %s13, 0
      %p89 = por %p87, %p88
      %p90 = scmp.ne.s32.totalorder %s79, %s82
      %p91 = scmp.eq.s32.totalorder %s18, 1
      %p92 = por %p90, %p91
      %p93 = scmp.ne.s32.totalorder %s82, %s83
      %p94 = scmp.eq.s32.totalorder %s18, 0
      %p95 = por %p93, %p94
      %p96 = scmp.ne.s32.totalorder %s82, %s83
      %p97 = scmp.eq.s32.totalorder %s19, 1
      %p98 = por %p96, %p97
      %p100 = scmp.ne.s32.totalorder %s83, %s99
      %p101 = scmp.eq.s32.totalorder %s19, 0
      %p102 = por %p100, %p101
      %p103 = scmp.le.s32.totalorder 1, %s13
      %p104 = scmp.lt.s32.totalorder %s13, 3
      %p105 = pnand %p103, %p104
      %p106 = pneg %p105
      // Predicated region
      $region9: #{tpu_custom_call.1} parent=5 // pred_check
        _
      $region10: #{tpu_custom_call.1} parent=5 // pred_check_branch
        %108 = sbr.rel (%p105) target = $region12
      $region11: #{tpu_custom_call.1} parent=5 // pred_region
        %s109 = ssub.s32 %s13, 1
        // Predicated region
        $region13: #{tpu_custom_call.1} parent=11 // pred_check
          %p110 = pneg %p46
        $region14: #{tpu_custom_call.1} parent=11 // pred_check_branch
          %112 = sbr.rel (%p110) target = $region16
        $region15: #{tpu_custom_call.1} parent=11 // pred_region
          %s114 = ssub.s32 4096, 4096
          %115 = vsyncadd [#allocation5], %s114
          %s116 = sshll.u32 [#allocation4], 4
          %s117 = int_to_ptr.vmem [resolvable:$true] %s116
          %122 = dma.hbm_to_vmem [thread:$0]  %s1, 4096, %s117, [#allocation5], 64, 64, 4
        $region16: #{tpu_custom_call.1} parent=11 // pred_fallthru
          _
        // Predicated region
        $region17: #{tpu_custom_call.1} parent=11 // pred_check
          %p123 = pneg %p67
        $region18: #{tpu_custom_call.1} parent=11 // pred_check_branch
          %125 = sbr.rel (%p123) target = $region20
        $region19: #{tpu_custom_call.1} parent=11 // pred_region
          _
        $region20: #{tpu_custom_call.1} parent=11 // pred_fallthru
          _
      $region12: #{tpu_custom_call.1} parent=5 // pred_fallthru
        _
      %p126 = scmp.lt.s32.totalorder %s13, 2
      // Predicated region
      $region21: #{tpu_custom_call.1} parent=5 // pred_check
        %p127 = pneg %p126
      $region22: #{tpu_custom_call.1} parent=5 // pred_check_branch
        %129 = sbr.rel (%p127) target = $region24
      $region23: #{tpu_custom_call.1} parent=5 // pred_region
        _
      $region24: #{tpu_custom_call.1} parent=5 // pred_fallthru
        _
      %p130 = scmp.le.s32.totalorder 1, %s13
      %p131 = scmp.lt.s32.totalorder %s13, 3
      %p132 = pnand %p130, %p131
      %p133 = pneg %p132
      // Predicated region
      $region25: #{tpu_custom_call.1} parent=5 // pred_check
        _
      $region26: #{tpu_custom_call.1} parent=5 // pred_check_branch
        %135 = sbr.rel (%p132) target = $region28
      $region27: #{tpu_custom_call.1} parent=5 // pred_region
        %s136 = ssub.s32 %s13, 1
        // Predicated region
        $region29: #{tpu_custom_call.1} parent=27 // pred_check
          %p137 = pneg %p46
        $region30: #{tpu_custom_call.1} parent=27 // pred_check_branch
          %139 = sbr.rel (%p137) target = $region32
        $region31: #{tpu_custom_call.1} parent=27 // pred_region
          %140 = dma.done [#allocation5], 4096
        $region32: #{tpu_custom_call.1} parent=27 // pred_fallthru
          _
        %p141 = pneg %p46
        %p142 = pneg %p43
        %p143 = pneg %p67
        %p144 = pneg %p64
        %p145 = pneg %p95
        %p146 = pneg %p92
        %s147 = sand.u32 %s82, 1
        %s148 = scalar_lea.sflag [#allocation6], %s147
        %s149 = sand.u32 %s82, 1
        %s150 = smul.addr %s149, 32
        %s151 = scalar_lea.vmem [#allocation7], %s150
        %s152 = smul.u32 2, %s23
        %s154 = sand.u32 %s23, 1
        %p155 = scmp.eq.s32.totalorder %s23, 0
        // Predicated region
        $region33: #{tpu_custom_call.1} parent=27 // pred_check
          %p156 = pneg %p155
        $region34: #{tpu_custom_call.1} parent=27 // pred_check_branch
          %158 = sbr.rel (%p156) target = $region36
        $region35: #{tpu_custom_call.1} parent=27 // pred_region
          %s159 = smul.u32 %s22, 4
          %s160 = smul.addr %s159, 64
          %s161 = scalar_lea.hbm %s0, %s160
          // Predicated region
          $region37: #{tpu_custom_call.1} parent=35 // pred_check
            _
          $region38: #{tpu_custom_call.1} parent=35 // pred_check_branch
            %163 = sbr.rel target = $region40
          $region39: #{tpu_custom_call.1} parent=35 // pred_region
            %164 = sst [smem:[#allocation10]] [#allocation9]
            %165 = sst [smem:[#allocation11]] [#allocation8]
          $region40: #{tpu_custom_call.1} parent=35 // pred_fallthru
            _
          %167 = shalt.err (0)
          %s169 = sshll.u32 [#allocation2], 4
          %s170 = int_to_ptr.vmem [resolvable:$true] %s169
          %172 = dma.hbm_to_vmem [thread:$0]  %s161, 256, %s170, [#allocation3]
        $region36: #{tpu_custom_call.1} parent=27 // pred_fallthru
          _
        %s173 = sadd.s32 %s23, 1
        %p174 = scmp.lt.s32.totalorder %s173, 1
        // Predicated region
        $region41: #{tpu_custom_call.1} parent=27 // pred_check
          %p175 = pneg %p174
        $region42: #{tpu_custom_call.1} parent=27 // pred_check_branch
          %177 = sbr.rel (%p175) target = $region44
        $region43: #{tpu_custom_call.1} parent=27 // pred_region
          %s178 = ssub.s32 1, %s154
          %s179 = smul.u32 %s173, 16
          %s180 = sshra.s32 %s179, 3
          %s181 = sand.u32 %s179, 7
          %s182 = smul.u32 %s22, 4
          %s183 = sadd.s32 %s180, %s182
          %s184 = smul.addr %s183, 64
          %s185 = scalar_lea.hbm %s0, %s184
          %s186 = smul.u32 %s178, 2
          %s187 = smul.addr %s186, 8
          %s188 = scalar_lea.vmem [#allocation2], %s187
          %s189 = scalar_lea.sflag [#allocation3], %s178
          // Predicated region
          $region45: #{tpu_custom_call.1} parent=43 // pred_check
            _
          $region46: #{tpu_custom_call.1} parent=43 // pred_check_branch
            %191 = sbr.rel target = $region48
          $region47: #{tpu_custom_call.1} parent=43 // pred_region
            %192 = sst [smem:[#allocation10]] [#allocation13]
            %193 = sst [smem:[#allocation11]] [#allocation12]
          $region48: #{tpu_custom_call.1} parent=43 // pred_fallthru
            _
          %195 = shalt.err (0)
          %s197 = sshll.u32 %s188, 4
          %s198 = int_to_ptr.vmem [resolvable:$true] %s197
          %200 = dma.hbm_to_vmem [thread:$0]  %s185, 256, %s198, %s189
        $region44: #{tpu_custom_call.1} parent=27 // pred_fallthru
          _
        %s201 = smul.u32 %s154, 2
        %s202 = smul.addr %s201, 8
        %s203 = scalar_lea.vmem [#allocation2], %s202
        %s204 = scalar_lea.sflag [#allocation3], %s154
        %s205 = smul.u32 4, 4
        %s206 = smul.u32 %s205, 1
        %s207 = sshll.u32 %s206, 4
        %208 = dma.done %s204, %s207
        %v209 = vld [vmem:[%s203] sm:$0xff]
        %v210 = vld [vmem:[%s203 + $0x8] sm:$0xff]
        %v211 = vld [vmem:[%s2] sm:$0x1]
        %v212 = vld [vmem:[#allocation4] sm:$0xf]
        %v213 = vld [vmem:[#allocation4 + $0x4] sm:$0xf]
        %v214 = vld [vmem:[#allocation4 + $0x8] sm:$0xf]
        %v215 = vld [vmem:[#allocation4 + $0xc] sm:$0xf]
        %v216 = vld [vmem:[#allocation4 + $0x10] sm:$0xf]
        %v217 = vld [vmem:[#allocation4 + $0x14] sm:$0xf]
        %v218 = vld [vmem:[#allocation4 + $0x18] sm:$0xf]
        %v219 = vld [vmem:[#allocation4 + $0x1c] sm:$0xf]
        %v220 = vld [vmem:[#allocation4 + $0x20] sm:$0xf]
        %v221 = vld [vmem:[#allocation4 + $0x24] sm:$0xf]
        %v222 = vld [vmem:[#allocation4 + $0x28] sm:$0xf]
        %v223 = vld [vmem:[#allocation4 + $0x2c] sm:$0xf]
        %v224 = vld [vmem:[#allocation4 + $0x30] sm:$0xf]
        %v225 = vld [vmem:[#allocation4 + $0x34] sm:$0xf]
        %v226 = vld [vmem:[#allocation4 + $0x38] sm:$0xf]
        %v227 = vld [vmem:[#allocation4 + $0x3c] sm:$0xf]
        %s228 = scalar_lea.vmem [#allocation4], 64
        %v229 = vld [vmem:[%s228] sm:$0xf]
        %v230 = vld [vmem:[%s228 + $0x4] sm:$0xf]
        %v231 = vld [vmem:[%s228 + $0x8] sm:$0xf]
        %v232 = vld [vmem:[%s228 + $0xc] sm:$0xf]
        %v233 = vld [vmem:[%s228 + $0x10] sm:$0xf]
        %v234 = vld [vmem:[%s228 + $0x14] sm:$0xf]
        %v235 = vld [vmem:[%s228 + $0x18] sm:$0xf]
        %v236 = vld [vmem:[%s228 + $0x1c] sm:$0xf]
        %v237 = vld [vmem:[%s228 + $0x20] sm:$0xf]
        %v238 = vld [vmem:[%s228 + $0x24] sm:$0xf]
        %v239 = vld [vmem:[%s228 + $0x28] sm:$0xf]
        %v240 = vld [vmem:[%s228 + $0x2c] sm:$0xf]
        %v241 = vld [vmem:[%s228 + $0x30] sm:$0xf]
        %v242 = vld [vmem:[%s228 + $0x34] sm:$0xf]
        %v243 = vld [vmem:[%s228 + $0x38] sm:$0xf]
        %v244 = vld [vmem:[%s228 + $0x3c] sm:$0xf]
        %v261 = vunpack.c.l.b16 %v229
        %v262 = vunpack.c.l.b16 %v230
        %v263 = vunpack.c.l.b16 %v231
        %v264 = vunpack.c.l.b16 %v232
        %v265 = vunpack.c.l.b16 %v233
        %v266 = vunpack.c.l.b16 %v234
        %v267 = vunpack.c.l.b16 %v235
        %v268 = vunpack.c.l.b16 %v236
        %v269 = vunpack.c.l.b16 %v237
        %v270 = vunpack.c.l.b16 %v238
        %v271 = vunpack.c.l.b16 %v239
        %v272 = vunpack.c.l.b16 %v240
        %v273 = vunpack.c.l.b16 %v241
        %v274 = vunpack.c.l.b16 %v242
        %v275 = vunpack.c.l.b16 %v243
        %v276 = vunpack.c.l.b16 %v244
        %v277 = vpack.c.b16 %v262, %v261
        %v278 = vpack.c.b16 %v264, %v263
        %v279 = vpack.c.b16 %v266, %v265
        %v280 = vpack.c.b16 %v268, %v267
        %v281 = vpack.c.b16 %v270, %v269
        %v282 = vpack.c.b16 %v272, %v271
        %v283 = vpack.c.b16 %v274, %v273
        %v284 = vpack.c.b16 %v276, %v275
        %293 = vmatprep.subr.bf16.mxu0 0
        %294 = vmatpush1.bf16.msra.mxu0 %v277
        %295 = vmatprep.subr.bf16.mxu0 0
        %296 = vmatpush1.bf16.msra.mxu0 %v278
        %297 = vmatprep.subr.bf16.mxu0 0
        %298 = vmatpush1.bf16.msra.mxu0 %v279
        %299 = vmatprep.subr.bf16.mxu0 0
        %300 = vmatpush1.bf16.msra.mxu0 %v280
        %301 = vmatprep.subr.bf16.mxu0 0
        %302 = vmatpush1.bf16.msra.mxu0 %v281
        %303 = vmatprep.subr.bf16.mxu0 0
        %304 = vmatpush1.bf16.msra.mxu0 %v282
        %305 = vmatprep.subr.bf16.mxu0 0
        %306 = vmatpush1.bf16.msra.mxu0 %v283
        %307 = vmatprep.subr.bf16.mxu0 0
        %308 = vmatpush1.bf16.msra.mxu0 %v284
        %309 = vmatprep.subr.bf16.mxu0 0
        %310 = vmatpush1.bf16.msra.mxu0 0
        %311 = vmatprep.subr.bf16.mxu0 0
        %312 = vmatpush1.bf16.msra.mxu0 0
        %313 = vmatprep.subr.bf16.mxu0 0
        %314 = vmatpush1.bf16.msra.mxu0 0
        %315 = vmatprep.subr.bf16.mxu0 0
        %316 = vmatpush1.bf16.msra.mxu0 0
        %317 = vmatprep.subr.bf16.mxu0 0
        %318 = vmatpush1.bf16.msra.mxu0 0
        %319 = vmatprep.subr.bf16.mxu0 0
        %320 = vmatpush1.bf16.msra.mxu0 0
        %321 = vmatprep.subr.bf16.mxu0 0
        %322 = vmatpush1.bf16.msra.mxu0 0
        %323 = vmatprep.subr.bf16.mxu0 0
        %324 = vmatpush1.bf16.msra.mxu0 0
        %325 = vmatprep.mubr.bf16.mxu0 0
        %326 = vmatmul.mubr.bf16.gmra.mrb[0].mxu0 %v209
        %v327 = vpop.f32.mrb[0].mxu0
        %v328 = vadd.f32 0.0, %v327
        %v329 = vpop.f32.mrb[0].mxu0
        %v330 = vpop.f32.mrb[0].mxu0
        %v331 = vadd.f32 0.0, %v330
        %v332 = vpop.f32.mrb[0].mxu0
        %333 = vdwg.mxu0
        %vm334 = vsmask.f32 7424
        %v336 = vshrl.u32 %v209, 16
        %v338 = vshll.u32 %v209, 16
        %v340 = vrot.slane %v338, 1
        %v341 = vor.u32 %v336, %v340
        %v343 = vshll.u32 %v210, 16
        %v345 = vrot.slane %v343, 1
        %v346 = vsel %vm334, %v341, %v345
        %v364 = vunpack.c.l.b16 %v212
        %v365 = vunpack.c.l.b16 %v213
        %v366 = vunpack.c.l.b16 %v214
        %v367 = vunpack.c.l.b16 %v215
        %v368 = vunpack.c.l.b16 %v216
        %v369 = vunpack.c.l.b16 %v217
        %v370 = vunpack.c.l.b16 %v218
        %v371 = vunpack.c.l.b16 %v219
        %v372 = vunpack.c.l.b16 %v220
        %v373 = vunpack.c.l.b16 %v221
        %v374 = vunpack.c.l.b16 %v222
        %v375 = vunpack.c.l.b16 %v223
        %v376 = vunpack.c.l.b16 %v224
        %v377 = vunpack.c.l.b16 %v225
        %v378 = vunpack.c.l.b16 %v226
        %v379 = vunpack.c.l.b16 %v227
        %v380 = vpack.c.b16 %v365, %v364
        %v381 = vpack.c.b16 %v367, %v366
        %v382 = vpack.c.b16 %v369, %v368
        %v383 = vpack.c.b16 %v371, %v370
        %v384 = vpack.c.b16 %v373, %v372
        %v385 = vpack.c.b16 %v375, %v374
        %v386 = vpack.c.b16 %v377, %v376
        %v387 = vpack.c.b16 %v379, %v378
        %396 = vmatprep.subr.bf16.mxu0 0
        %397 = vmatpush1.bf16.msra.mxu0 %v380
        %398 = vmatprep.subr.bf16.mxu0 0
        %399 = vmatpush1.bf16.msra.mxu0 %v381
        %400 = vmatprep.subr.bf16.mxu0 0
        %401 = vmatpush1.bf16.msra.mxu0 %v382
        %402 = vmatprep.subr.bf16.mxu0 0
        %403 = vmatpush1.bf16.msra.mxu0 %v383
        %404 = vmatprep.subr.bf16.mxu0 0
        %405 = vmatpush1.bf16.msra.mxu0 %v384
        %406 = vmatprep.subr.bf16.mxu0 0
        %407 = vmatpush1.bf16.msra.mxu0 %v385
        %408 = vmatprep.subr.bf16.mxu0 0
        %409 = vmatpush1.bf16.msra.mxu0 %v386
        %410 = vmatprep.subr.bf16.mxu0 0
        %411 = vmatpush1.bf16.msra.mxu0 %v387
        %412 = vmatprep.subr.bf16.mxu0 0
        %413 = vmatpush1.bf16.msra.mxu0 0
        %414 = vmatprep.subr.bf16.mxu0 0
        %415 = vmatpush1.bf16.msra.mxu0 0
        %416 = vmatprep.subr.bf16.mxu0 0
        %417 = vmatpush1.bf16.msra.mxu0 0
        %418 = vmatprep.subr.bf16.mxu0 0
        %419 = vmatpush1.bf16.msra.mxu0 0
        %420 = vmatprep.subr.bf16.mxu0 0
        %421 = vmatpush1.bf16.msra.mxu0 0
        %422 = vmatprep.subr.bf16.mxu0 0
        %423 = vmatpush1.bf16.msra.mxu0 0
        %424 = vmatprep.subr.bf16.mxu0 0
        %425 = vmatpush1.bf16.msra.mxu0 0
        %426 = vmatprep.subr.bf16.mxu0 0
        %427 = vmatpush1.bf16.msra.mxu0 0
        %428 = vmatprep.mubr.bf16.mxu0 0
        %429 = vmatmul.mubr.bf16.gmra.mrb[0].mxu0 %v346
        %v430 = vpop.f32.mrb[0].mxu0
        %v431 = vadd.f32 %v328, %v430
        %v432 = vpop.f32.mrb[0].mxu0
        %v433 = vpop.f32.mrb[0].mxu0
        %v434 = vadd.f32 %v331, %v433
        %v435 = vpop.f32.mrb[0].mxu0
        %436 = vdwg.mxu0
        %v438 = vlaneseq
        %v439 = vshrl.u32 %v438, 7
        %v440 = vsub.s32 0, %v439
        %v441 = vrot.slane %v211, %v440
        %v443 = vadd.f32 %v431, %v441
        %v444 = vadd.f32 %v434, %v441
        %v445 = vmax.f32 %v443, 0.0
        %v446 = vmax.f32 %v444, 0.0
        %447 = vst [vmem:[%s151] sm:$0xff] %v445
        %448 = vst [vmem:[%s151 + $0x10] sm:$0xff] %v446
        %s449 = scalar_lea.vmem [#allocation4], 128
        %v450 = vld [vmem:[%s449] sm:$0xf]
        %v451 = vld [vmem:[%s449 + $0x4] sm:$0xf]
        %v452 = vld [vmem:[%s449 + $0x8] sm:$0xf]
        %v453 = vld [vmem:[%s449 + $0xc] sm:$0xf]
        %v454 = vld [vmem:[%s449 + $0x10] sm:$0xf]
        %v455 = vld [vmem:[%s449 + $0x14] sm:$0xf]
        %v456 = vld [vmem:[%s449 + $0x18] sm:$0xf]
        %v457 = vld [vmem:[%s449 + $0x1c] sm:$0xf]
        %v458 = vld [vmem:[%s449 + $0x20] sm:$0xf]
        %v459 = vld [vmem:[%s449 + $0x24] sm:$0xf]
        %v460 = vld [vmem:[%s449 + $0x28] sm:$0xf]
        %v461 = vld [vmem:[%s449 + $0x2c] sm:$0xf]
        %v462 = vld [vmem:[%s449 + $0x30] sm:$0xf]
        %v463 = vld [vmem:[%s449 + $0x34] sm:$0xf]
        %v464 = vld [vmem:[%s449 + $0x38] sm:$0xf]
        %v465 = vld [vmem:[%s449 + $0x3c] sm:$0xf]
        %s466 = scalar_lea.vmem [#allocation4], 192
        %v467 = vld [vmem:[%s466] sm:$0xf]
        %v468 = vld [vmem:[%s466 + $0x4] sm:$0xf]
        %v469 = vld [vmem:[%s466 + $0x8] sm:$0xf]
        %v470 = vld [vmem:[%s466 + $0xc] sm:$0xf]
        %v471 = vld [vmem:[%s466 + $0x10] sm:$0xf]
        %v472 = vld [vmem:[%s466 + $0x14] sm:$0xf]
        %v473 = vld [vmem:[%s466 + $0x18] sm:$0xf]
        %v474 = vld [vmem:[%s466 + $0x1c] sm:$0xf]
        %v475 = vld [vmem:[%s466 + $0x20] sm:$0xf]
        %v476 = vld [vmem:[%s466 + $0x24] sm:$0xf]
        %v477 = vld [vmem:[%s466 + $0x28] sm:$0xf]
        %v478 = vld [vmem:[%s466 + $0x2c] sm:$0xf]
        %v479 = vld [vmem:[%s466 + $0x30] sm:$0xf]
        %v480 = vld [vmem:[%s466 + $0x34] sm:$0xf]
        %v481 = vld [vmem:[%s466 + $0x38] sm:$0xf]
        %v482 = vld [vmem:[%s466 + $0x3c] sm:$0xf]
        %v499 = vunpack.c.l.b16 %v467
        %v500 = vunpack.c.l.b16 %v468
        %v501 = vunpack.c.l.b16 %v469
        %v502 = vunpack.c.l.b16 %v470
        %v503 = vunpack.c.l.b16 %v471
        %v504 = vunpack.c.l.b16 %v472
        %v505 = vunpack.c.l.b16 %v473
        %v506 = vunpack.c.l.b16 %v474
        %v507 = vunpack.c.l.b16 %v475
        %v508 = vunpack.c.l.b16 %v476
        %v509 = vunpack.c.l.b16 %v477
        %v510 = vunpack.c.l.b16 %v478
        %v511 = vunpack.c.l.b16 %v479
        %v512 = vunpack.c.l.b16 %v480
        %v513 = vunpack.c.l.b16 %v481
        %v514 = vunpack.c.l.b16 %v482
        %v515 = vpack.c.b16 %v500, %v499
        %v516 = vpack.c.b16 %v502, %v501
        %v517 = vpack.c.b16 %v504, %v503
        %v518 = vpack.c.b16 %v506, %v505
        %v519 = vpack.c.b16 %v508, %v507
        %v520 = vpack.c.b16 %v510, %v509
        %v521 = vpack.c.b16 %v512, %v511
        %v522 = vpack.c.b16 %v514, %v513
        %531 = vmatprep.subr.bf16.mxu0 0
        %532 = vmatpush1.bf16.msra.mxu0 %v515
        %533 = vmatprep.subr.bf16.mxu0 0
        %534 = vmatpush1.bf16.msra.mxu0 %v516
        %535 = vmatprep.subr.bf16.mxu0 0
        %536 = vmatpush1.bf16.msra.mxu0 %v517
        %537 = vmatprep.subr.bf16.mxu0 0
        %538 = vmatpush1.bf16.msra.mxu0 %v518
        %539 = vmatprep.subr.bf16.mxu0 0
        %540 = vmatpush1.bf16.msra.mxu0 %v519
        %541 = vmatprep.subr.bf16.mxu0 0
        %542 = vmatpush1.bf16.msra.mxu0 %v520
        %543 = vmatprep.subr.bf16.mxu0 0
        %544 = vmatpush1.bf16.msra.mxu0 %v521
        %545 = vmatprep.subr.bf16.mxu0 0
        %546 = vmatpush1.bf16.msra.mxu0 %v522
        %547 = vmatprep.subr.bf16.mxu0 0
        %548 = vmatpush1.bf16.msra.mxu0 0
        %549 = vmatprep.subr.bf16.mxu0 0
        %550 = vmatpush1.bf16.msra.mxu0 0
        %551 = vmatprep.subr.bf16.mxu0 0
        %552 = vmatpush1.bf16.msra.mxu0 0
        %553 = vmatprep.subr.bf16.mxu0 0
        %554 = vmatpush1.bf16.msra.mxu0 0
        %555 = vmatprep.subr.bf16.mxu0 0
        %556 = vmatpush1.bf16.msra.mxu0 0
        %557 = vmatprep.subr.bf16.mxu0 0
        %558 = vmatpush1.bf16.msra.mxu0 0
        %559 = vmatprep.subr.bf16.mxu0 0
        %560 = vmatpush1.bf16.msra.mxu0 0
        %561 = vmatprep.subr.bf16.mxu0 0
        %562 = vmatpush1.bf16.msra.mxu0 0
        %563 = vmatprep.mubr.bf16.mxu0 0
        %564 = vmatmul.mubr.bf16.gmra.mrb[0].mxu0 %v346
        %v565 = vpop.f32.mrb[0].mxu0
        %v566 = vadd.f32 0.0, %v565
        %v567 = vpop.f32.mrb[0].mxu0
        %v568 = vpop.f32.mrb[0].mxu0
        %v569 = vadd.f32 0.0, %v568
        %v570 = vpop.f32.mrb[0].mxu0
        %571 = vdwg.mxu0
        %vm574 = vcmask 1046528
        %v575 = vrot.slane %v209, 1
        %v576 = vrot.slane %v210, 1
        %v577 = vsel %vm574, %v575, %v576
        %v595 = vunpack.c.l.b16 %v450
        %v596 = vunpack.c.l.b16 %v451
        %v597 = vunpack.c.l.b16 %v452
        %v598 = vunpack.c.l.b16 %v453
        %v599 = vunpack.c.l.b16 %v454
        %v600 = vunpack.c.l.b16 %v455
        %v601 = vunpack.c.l.b16 %v456
        %v602 = vunpack.c.l.b16 %v457
        %v603 = vunpack.c.l.b16 %v458
        %v604 = vunpack.c.l.b16 %v459
        %v605 = vunpack.c.l.b16 %v460
        %v606 = vunpack.c.l.b16 %v461
        %v607 = vunpack.c.l.b16 %v462
        %v608 = vunpack.c.l.b16 %v463
        %v609 = vunpack.c.l.b16 %v464
        %v610 = vunpack.c.l.b16 %v465
        %v611 = vpack.c.b16 %v596, %v595
        %v612 = vpack.c.b16 %v598, %v597
        %v613 = vpack.c.b16 %v600, %v599
        %v614 = vpack.c.b16 %v602, %v601
        %v615 = vpack.c.b16 %v604, %v603
        %v616 = vpack.c.b16 %v606, %v605
        %v617 = vpack.c.b16 %v608, %v607
        %v618 = vpack.c.b16 %v610, %v609
        %627 = vmatprep.subr.bf16.mxu0 0
        %628 = vmatpush1.bf16.msra.mxu0 %v611
        %629 = vmatprep.subr.bf16.mxu0 0
        %630 = vmatpush1.bf16.msra.mxu0 %v612
        %631 = vmatprep.subr.bf16.mxu0 0
        %632 = vmatpush1.bf16.msra.mxu0 %v613
        %633 = vmatprep.subr.bf16.mxu0 0
        %634 = vmatpush1.bf16.msra.mxu0 %v614
        %635 = vmatprep.subr.bf16.mxu0 0
        %636 = vmatpush1.bf16.msra.mxu0 %v615
        %637 = vmatprep.subr.bf16.mxu0 0
        %638 = vmatpush1.bf16.msra.mxu0 %v616
        %639 = vmatprep.subr.bf16.mxu0 0
        %640 = vmatpush1.bf16.msra.mxu0 %v617
        %641 = vmatprep.subr.bf16.mxu0 0
        %642 = vmatpush1.bf16.msra.mxu0 %v618
        %643 = vmatprep.subr.bf16.mxu0 0
        %644 = vmatpush1.bf16.msra.mxu0 0
        %645 = vmatprep.subr.bf16.mxu0 0
        %646 = vmatpush1.bf16.msra.mxu0 0
        %647 = vmatprep.subr.bf16.mxu0 0
        %648 = vmatpush1.bf16.msra.mxu0 0
        %649 = vmatprep.subr.bf16.mxu0 0
        %650 = vmatpush1.bf16.msra.mxu0 0
        %651 = vmatprep.subr.bf16.mxu0 0
        %652 = vmatpush1.bf16.msra.mxu0 0
        %653 = vmatprep.subr.bf16.mxu0 0
        %654 = vmatpush1.bf16.msra.mxu0 0
        %655 = vmatprep.subr.bf16.mxu0 0
        %656 = vmatpush1.bf16.msra.mxu0 0
        %657 = vmatprep.subr.bf16.mxu0 0
        %658 = vmatpush1.bf16.msra.mxu0 0
        %659 = vmatprep.mubr.bf16.mxu0 0
        %660 = vmatmul.mubr.bf16.gmra.mrb[0].mxu0 %v577
        %v661 = vpop.f32.mrb[0].mxu0
        %v662 = vadd.f32 %v566, %v661
        %v663 = vpop.f32.mrb[0].mxu0
        %v664 = vpop.f32.mrb[0].mxu0
        %v665 = vadd.f32 %v569, %v664
        %v666 = vpop.f32.mrb[0].mxu0
        %667 = vdwg.mxu0
        %v668 = vadd.f32 %v662, %v441
        %v669 = vadd.f32 %v665, %v441
        %v670 = vmax.f32 %v668, 0.0
        %v671 = vmax.f32 %v669, 0.0
        %672 = vst [vmem:[%s151 + $0x8] sm:$0xff] %v670
        %673 = vst [vmem:[%s151 + $0x18] sm:$0xff] %v671
        %s674 = sand.u32 %s82, 1
        %s675 = scalar_lea.sflag [#allocation6], %s674
        %s676 = sand.u32 %s82, 1
        %s677 = smul.addr %s676, 32
        %s678 = scalar_lea.vmem [#allocation7], %s677
        // Predicated region
        $region49: #{tpu_custom_call.1} parent=27 // pred_check
          %p679 = pneg %p92
        $region50: #{tpu_custom_call.1} parent=27 // pred_check_branch
          %681 = sbr.rel (%p679) target = $region52
        $region51: #{tpu_custom_call.1} parent=27 // pred_region
          %s682 = smul.u32 2, %s23
          %s684 = ssub.s32 512, 512
          %685 = vsyncadd %s675, %s684
          %s686 = smul.addr %s682, 2
          %s687 = smul.addr %s22, 4
          %s688 = sadd.s32 %s686, %s687
          %s689 = smul.addr %s688, 128
          %s690 = scalar_lea.hbm %s3, %s689
          %s691 = sshll.u32 %s678, 4
          %s692 = int_to_ptr.vmem [resolvable:$true] %s691
          %697 = dma.vmem_to_hbm [thread:$0]  %s692, 512, %s690, %s675, 256, 256, 16
        $region52: #{tpu_custom_call.1} parent=27 // pred_fallthru
          _
      $region28: #{tpu_custom_call.1} parent=5 // pred_fallthru
        _
      %p698 = scmp.le.s32.totalorder 2, %s13
      // Predicated region
      $region53: #{tpu_custom_call.1} parent=5 // pred_check
        %p699 = pneg %p698
      $region54: #{tpu_custom_call.1} parent=5 // pred_check_branch
        %701 = sbr.rel (%p699) target = $region56
      $region55: #{tpu_custom_call.1} parent=5 // pred_region
        %s702 = ssub.s32 %s13, 2
        // Predicated region
        $region57: #{tpu_custom_call.1} parent=55 // pred_check
          %p703 = pneg %p98
        $region58: #{tpu_custom_call.1} parent=55 // pred_check_branch
          %705 = sbr.rel (%p703) target = $region60
        $region59: #{tpu_custom_call.1} parent=55 // pred_region
          %s706 = sand.u32 %s83, 1
          %s707 = scalar_lea.sflag [#allocation6], %s706
          %s708 = sand.u32 %s83, 1
          %s709 = smul.addr %s708, 32
          %s710 = scalar_lea.vmem [#allocation7], %s709
          %711 = dma.done %s707, 512
        $region60: #{tpu_custom_call.1} parent=55 // pred_fallthru
          _
      $region56: #{tpu_custom_call.1} parent=5 // pred_fallthru
        _
    $region6: #{tpu_custom_call.1} parent=1 // loop_footer
      %s17 = sadd.s32 1, %s13
    $region7: #{tpu_custom_call.1} parent=1 // loop_footer_branch
      %12 = sbr.rel target = $region3
    $region8: #{tpu_custom_call.1} parent=1 // loop_exit
      _
    %712 = vsyncpa [#allocation5], 1
    %s713 = scalar_lea.sflag [#allocation5], 1
    %714 = vsyncpa %s713, 1
    %715 = vsyncpa [#allocation6], 1
    %s716 = scalar_lea.sflag [#allocation6], 1
    %717 = vsyncpa %s716, 1
  %718 = vsyncmov [#allocation3]
  %s719 = vpop.sfrf %718
  %p720 = scmp.eq.s32.totalorder %s719, 0
  %p721 = pneg %p720
  %723 = shalt.err (%p721)
  %s724 = scalar_lea.sflag [#allocation3], 1
  %725 = vsyncmov %s724
  %s726 = vpop.sfrf %725
  %p727 = scmp.eq.s32.totalorder %s726, 0
  %p728 = pneg %p727
  %730 = shalt.err (%p728)

</llo_original>
